<compile_context>
chip_gen: v5e
topology: v5e:2x2
jax: 0.10.0
libtpu: 0.0.40
codegen_flags: <defaults>
</compile_context>

<pallas_src>
import functools

import jax
import jax.numpy as jnp
from jax.experimental import pallas as pl
from jax.experimental.pallas import tpu as pltpu

# --- small, TPU-friendly dimensions consistent with the module's structure ---
BASE_DIM = 96
CONSCIOUSNESS_DIM = 24
QUANTUM_DIM = 8
CLIFFORD_DIM = 16
TOTAL_DIM = BASE_DIM + CONSCIOUSNESS_DIM + QUANTUM_DIM  # 128
THETA_NC = 1e-25

_SMALL_BATCH_FAST_PATH = 64   # below this a fused XLA dot beats pallas dispatch
_MAX_BATCH_TILE = 1024        # x+out tiles ~1.8 MiB double-buffered at 1024 rows


def _round_up(n, m):
    return ((n + m - 1) // m) * m


# ----------------------------------------------------------------------------
# Deterministic parameter construction + static geometric scalars (glue, JAX)
# ----------------------------------------------------------------------------
def _clifford_generators(dim, key):
    c64 = jnp.complex64
    sx = jnp.array([[0, 1], [1, 0]], dtype=c64)
    sy = jnp.array([[0, -1j], [1j, 0]], dtype=c64)
    sz = jnp.array([[1, 0], [0, -1]], dtype=c64)
    i2 = jnp.eye(2, dtype=c64)
    n_kron = max(0, dim.bit_length() - 2)
    gens = []
    for i in range(dim):
        if i in (0, 1, 2):
            g = (sz, sx, sy)[i]
            for _ in range(n_kron):
                g = jnp.kron(g, i2)
        else:
            bs = min(64, 2 ** min(6, i))
            key, kr, ki = jax.random.split(key, 3)
            g = (jax.random.normal(kr, (bs, bs), jnp.float32)
                 + 1j * jax.random.normal(ki, (bs, bs), jnp.float32)).astype(c64)
            g = (g - jnp.conj(g.T)) / 2          # anti-Hermitian part
            g = g / jnp.linalg.norm(g)           # Frobenius normalize
        gens.append(g)
    return gens


def _build_geometry(key):
    """Builds the static manifold data and precomputes every x-independent
    scalar of the torch forward.  Runs once; not on the hot path."""
    c64 = jnp.complex64
    D = TOTAL_DIM
    kg, kc_r, kc_i = jax.random.split(key, 3)
    gens = _clifford_generators(CLIFFORD_DIM, kg)
    theta = jnp.float32(THETA_NC)

    # --- noncommutative metric: I + theta * (embedded generators), Hermitianized
    metric = jnp.eye(D, dtype=c64)
    for i in range(min(10, len(gens))):
        g = gens[i]
        s = g.shape[0]
        if s <= D:
            metric = metric.at[:s, :s].add(g * theta)
    metric = (metric + jnp.conj(metric.T)) / 2

    # --- Dirac operator: sum_i 1j*(i+1)/D * embedded gamma_i, anti-Hermitianized
    dirac = jnp.zeros((D, D), dtype=c64)
    for i, g in enumerate(gens[:8]):
        s = g.shape[0]
        if s <= D:
            coeff = 1j * (i + 1) / D
            dirac = dirac.at[:s, :s].add(coeff * g)
    dirac = (dirac - jnp.conj(dirac.T)) / 2
    dirac_real = jnp.real(dirac).astype(jnp.float32)

    # --- connection: random (D,D,D) complex * theta, symmetric in last two axes
    conn = (jax.random.normal(kc_r, (D, D, D), jnp.float32)
            + 1j * jax.random.normal(kc_i, (D, D, D), jnp.float32)).astype(c64) * theta
    conn = (conn + jnp.transpose(conn, (0, 2, 1))) / 2

    # --- Ricci tensor: nonzero only where the torch curvature loop writes,
    #     i.e. ricci[mu,nu] = conn[mu,nu,nu] - conn[nu,mu,nu], mu,nu<10, mu!=nu
    ricci = jnp.zeros((D, D), dtype=c64)
    m = min(10, D)
    for mu in range(m):
        for nu in range(m):
            if mu != nu:
                ricci = ricci.at[mu, nu].set(conn[mu, nu, nu] - conn[nu, mu, nu])

    # --- pinv(metric) via real 2Dx2D block embedding (avoids complex SVD on TPU)
    A = jnp.real(metric).astype(jnp.float32)
    Bm = jnp.imag(metric).astype(jnp.float32)
    block = jnp.block([[A, -Bm], [Bm, A]])
    P = jnp.linalg.pinv(block)
    minv_real = P[:D, :D].astype(jnp.float32)
    minv_imag = P[D:, :D].astype(jnp.float32)

    # --- x-independent scalars (hoisted out of the kernel entirely) ----------
    geometric_invariant = jnp.sum(jnp.diagonal(A)).astype(jnp.float32)
    rr_T = jnp.real(ricci).T.astype(jnp.float32)
    ri_T = jnp.imag(ricci).T.astype(jnp.float32)
    ricci_scalar = (jnp.sum(minv_real * rr_T) - jnp.sum(minv_imag * ri_T)
                    ).astype(jnp.float32)
    topological_charge = jnp.float32(sum((-1) ** i for i in range(D)))  # == 0

    return {
        "dirac_real": dirac_real,                       # (D, D) f32 -> kernel operand
        "geometric_invariant": geometric_invariant,     # scalar f32
        "ricci_scalar": ricci_scalar,                   # scalar f32
        "topological_charge": topological_charge,       # scalar f32
    }


# ----------------------------------------------------------------------------
# Pallas kernel: Dirac matmul only (the sole x-dependent op of the forward)
# ----------------------------------------------------------------------------
def _dirac_kernel(x_ref, dirac_ref, o_ref, *, f_in):
    # (TB, F) @ (F, 128) on the MXU, f32 accumulate.  The Dirac weight stays
    # VMEM-resident (constant index_map); statically slicing its first F rows
    # here is exactly zero_pad(x) @ D without ever materializing the pad.
    o_ref[...] = jnp.dot(x_ref[...], dirac_ref[:f_in, :],
                         preferred_element_type=jnp.float32)


def noncommutative_manifold_forward(x, geom):
    D = TOTAL_DIM
    x = x.astype(jnp.float32)
    B = x.shape[0]

    # torch: truncate if wider than the manifold.  Narrower inputs are handled
    # pad-free inside the kernel (contract only the first F rows of D).
    if x.shape[1] >= D:
        x = x[:, :D]
    F = x.shape[1]
    dirac = geom["dirac_real"]            # (D, D) f32

    if B <= _SMALL_BATCH_FAST_PATH:
        # Small-batch fast path: custom-call dispatch + pipeline prologue
        # dwarfs a tiny matmul; a fused XLA dot is strictly faster here.
        dirac_result = jnp.dot(x, dirac[:F, :],
                               precision=jax.lax.Precision.HIGHEST,
                               preferred_element_type=jnp.float32)
    else:
        # Batch tile: multiple of 8 sublanes, <= 1024 rows, and <= ceil(B/2)
        # so the grid has >= 2 steps (keeps both v7x TensorCores busy).
        TB = min(_MAX_BATCH_TILE, _round_up(pl.cdiv(B, 2), 8))
        grid = (pl.cdiv(B, TB),)          # partial last block masked by Pallas

        dirac_result = pl.pallas_call(
            functools.partial(_dirac_kernel, f_in=F),
            grid=grid,
            in_specs=[
                # x streamed at native width (F equals the full array dim).
                pl.BlockSpec((TB, F), lambda i: (i, 0)),
                # Dirac weights: constant index_map -> VMEM-resident.
                pl.BlockSpec((D, D), lambda i: (0, 0)),
            ],
            out_specs=pl.BlockSpec((TB, D), lambda i: (i, 0)),
            out_shape=jax.ShapeDtypeStruct((B, D), jnp.float32),
            compiler_params=pltpu.CompilerParams(
                dimension_semantics=("parallel",)),
            cost_estimate=pl.CostEstimate(
                flops=2 * B * F * D,
                transcendentals=0,
                bytes_accessed=(B * F + B * D + D * D) * 4),
        )(x, dirac)

    return {
        "dirac_eigenstate": dirac_result,
        "ricci_scalar": geom["ricci_scalar"],
        "geometric_invariant": geom["geometric_invariant"],
        "topological_charge": geom["topological_charge"],
        "spectral_dimension": jnp.float32(TOTAL_DIM),
        "noncommutative_parameter": jnp.float32(THETA_NC),
        "clifford_dimension": jnp.float32(CLIFFORD_DIM),
    }


if __name__ == "__main__":
    key = jax.random.PRNGKey(0)
    k_geom, k_x_small, k_x_big = jax.random.split(key, 3)
    geometry = _build_geometry(k_geom)

    # Tiny batch consistent with the module's typical use -> XLA fast path.
    x_small = jax.random.normal(k_x_small, (2, BASE_DIM), dtype=jnp.float32)
    res_small = noncommutative_manifold_forward(x_small, geometry)

    # Larger batch -> Pallas streaming-matmul path (2 grid steps of 256 rows).
    x_big = jax.random.normal(k_x_big, (512, BASE_DIM), dtype=jnp.float32)
    res_big = noncommutative_manifold_forward(x_big, geometry)

    jax.block_until_ready((res_small, res_big))

    # Sanity-check the Pallas path against a high-precision XLA dot.
    ref = jnp.dot(x_big, geometry["dirac_real"][:BASE_DIM, :],
                  precision=jax.lax.Precision.HIGHEST,
                  preferred_element_type=jnp.float32)
    assert jnp.allclose(res_big["dirac_eigenstate"], ref,
                        rtol=1e-2, atol=1e-4), "Pallas Dirac matmul mismatch"

    print("KERNEL_OK")
</pallas_src>

<mosaic_0001>
module attributes {stable_mosaic.version = 11 : i64} {
  func.func @_dirac_kernel(%arg0: i32, %arg1: memref<256x96xf32, #tpu.memory_space<vmem>>, %arg2: memref<128x128xf32, #tpu.memory_space<vmem>>, %arg3: memref<256x128xf32, #tpu.memory_space<vmem>>) attributes {dimension_semantics = [#tpu.dimension_semantics<parallel>], iteration_bounds = array<i64: 2>, scalar_prefetch = 0 : i64, scratch_operands = 0 : i64, tpu.core_type = #tpu.core_type<tc>, window_params = [{transform_indices = @transform_0, window_bounds = array<i64: 256, 96>}, {pipeline_mode = #tpu.pipeline_mode<synchronous>, transform_indices = @transform_1, window_bounds = array<i64: 128, 128>}, {transform_indices = @transform_2, window_bounds = array<i64: 256, 128>}]} {
    %c0 = arith.constant 0 : index
    %c0_0 = arith.constant 0 : index
    %0 = vector.load %arg1[%c0, %c0_0] : memref<256x96xf32, #tpu.memory_space<vmem>>, vector<256x96xf32>
    %c0_1 = arith.constant 0 : index
    %c0_2 = arith.constant 0 : index
    %1 = vector.load %arg2[%c0_1, %c0_2] : memref<128x128xf32, #tpu.memory_space<vmem>>, vector<96x128xf32>
    %cst = arith.constant dense<0.000000e+00> : vector<256x128xf32>
    %2 = tpu.matmul %0, %1, %cst {dimension_numbers = #tpu.dot_dimension_numbers<[1], [0], [0], [1], [0, 0, 1, 1], [], []>} : vector<256x96xf32>, vector<96x128xf32>, vector<256x128xf32> -> vector<256x128xf32>
    %c0_3 = arith.constant 0 : index
    %c0_4 = arith.constant 0 : index
    %3 = vector.load %arg3[%c0_3, %c0_4] : memref<256x128xf32, #tpu.memory_space<vmem>>, vector<256x128xf32>
    tpu.vector_store %arg3[%c0_3, %c0_4], %2 {strides = array<i32>} : memref<256x128xf32, #tpu.memory_space<vmem>>, vector<256x128xf32>,
    return
  }
  func.func @transform_0(%arg0: i32) -> (i32, i32) {
    %c0_i32 = arith.constant 0 : i32
    %c0_i32_0 = arith.constant 0 : i32
    return %arg0, %c0_i32 : i32, i32
  }
  func.func @transform_1(%arg0: i32) -> (i32, i32) {
    %c0_i32 = arith.constant 0 : i32
    %c0_i32_0 = arith.constant 0 : i32
    %c0_i32_1 = arith.constant 0 : i32
    return %c0_i32, %c0_i32_0 : i32, i32
  }
  func.func @transform_2(%arg0: i32) -> (i32, i32) {
    %c0_i32 = arith.constant 0 : i32
    %c0_i32_0 = arith.constant 0 : i32
    return %arg0, %c0_i32 : i32, i32
  }
}

</mosaic_0001>

<llo_original>
// kernel: tpu_custom_call.1
$region0: #{tpu_custom_call.1}
  #allocation0 [shape = 'u32[]', space=smem, size = 0x4, offset = 0x4, fixed_abs, tag = 'smem constant byte address 0x4 - core index']
  #allocation1 [shape = 'u32[72,128]{1,0:T(1,128)}', space=vmem, size = 0x9000, scoped, tag = 'internal scratch']
  %s0 = inlined_call_operand.vmem [shape: f32[512,96], index: 0, kind: input, shape index: {}]
  %s1 = inlined_call_operand.vmem [shape: f32[128,128], index: 1, kind: input, shape index: {}]
  %s2 = inlined_call_operand.hbm [shape: f32[512,128], index: 2, kind: output, shape index: {}]
  %s3 = sld [smem:[#allocation0]]
  $region41: #{tpu_custom_call.1} parent=0
    _
  %s5 = ssub.s32 1, %s3
  %s6 = scalar_select 0, %s5, %s3
  $region1: #{tpu_custom_call.1} parent=0
    #allocation2 [shape = 'u8[262144]{0}', space=vmem, size = 0x40000, scoped, tag = 'output window, operand 0']
    #allocation3 [shape = 's32[2]{0}', space=sflag, size = 0x8, scoped, tag = 'scoped memory for tpu_custom_call.1']
    %7 = vsyncpa [#allocation3], 0
    %s8 = scalar_lea.sflag [#allocation3], 1
    %9 = vsyncpa %s8, 0
    loop: start=0, step=1, limit=4
    $region2: #{tpu_custom_call.1} parent=1 // loop_pre_header
      _
    $region3: #{tpu_custom_call.1} parent=1 // loop_header
      %s11 = sphi 0, %s15
      %p12 = scmp.ge.s32.totalorder %s11, 4
      %s21 = sphi 0, %s23
      %s24 = sphi 0, %s21
      %s25 = sphi 0, %s24
      %s41 = sphi 0, %s25
      %s45 = sphi 0, %s45
      %s47 = sphi 0, %s45
      %s48 = sphi 0, %s47
      %s62 = sphi 0, %s48
      %s68 = sphi 0, %s70
      %s71 = sphi 0, %s68
      %s72 = sphi 0, %s71
      %s88 = sphi 0, %s72
    $region4: #{tpu_custom_call.1} parent=1 // loop_header_branch
      %14 = sbr.rel (%p12) target = $region8
    $region5: #{tpu_custom_call.1} parent=1 // loop_body
      %s16 = ssub.s32 %s11, 1
      %s17 = ssub.s32 %s11, 2
      %s18 = sadd.s32 %s11, 1
      %s19 = ssub.s32 %s11, %s18
      %p20 = scmp.eq.s32.totalorder %s19, 0
      %s22 = sadd.s32 %s21, 1
      %s23 = scalar_select %p20, %s21, %s22
      %p26 = pneg %p20
      %p27 = scmp.eq.s32.totalorder %s11, 1
      %p28 = por %p26, %p27
      %p29 = scmp.ne.s32.totalorder %s21, %s24
      %p30 = scmp.eq.s32.totalorder %s11, 0
      %p31 = por %p29, %p30
      %p32 = scmp.ne.s32.totalorder %s21, %s24
      %p33 = scmp.eq.s32.totalorder %s16, 1
      %p34 = por %p32, %p33
      %p35 = scmp.ne.s32.totalorder %s24, %s25
      %p36 = scmp.eq.s32.totalorder %s16, 0
      %p37 = por %p35, %p36
      %p38 = scmp.ne.s32.totalorder %s24, %s25
      %p39 = scmp.eq.s32.totalorder %s17, 1
      %p40 = por %p38, %p39
      %p42 = scmp.ne.s32.totalorder %s25, %s41
      %p43 = scmp.eq.s32.totalorder %s17, 0
      %p44 = por %p42, %p43
      %s46 = sadd.s32 %s45, 1
      %p49 = scmp.eq.s32.totalorder %s11, 1
      %p50 = scmp.ne.s32.totalorder %s45, %s47
      %p51 = scmp.eq.s32.totalorder %s11, 0
      %p52 = por %p50, %p51
      %p53 = scmp.ne.s32.totalorder %s45, %s47
      %p54 = scmp.eq.s32.totalorder %s16, 1
      %p55 = por %p53, %p54
      %p56 = scmp.ne.s32.totalorder %s47, %s48
      %p57 = scmp.eq.s32.totalorder %s16, 0
      %p58 = por %p56, %p57
      %p59 = scmp.ne.s32.totalorder %s47, %s48
      %p60 = scmp.eq.s32.totalorder %s17, 1
      %p61 = por %p59, %p60
      %p63 = scmp.ne.s32.totalorder %s48, %s62
      %p64 = scmp.eq.s32.totalorder %s17, 0
      %p65 = por %p63, %p64
      %s66 = ssub.s32 %s11, %s18
      %p67 = scmp.eq.s32.totalorder %s66, 0
      %s69 = sadd.s32 %s68, 1
      %s70 = scalar_select %p67, %s68, %s69
      %p73 = pneg %p67
      %p74 = scmp.eq.s32.totalorder %s11, 1
      %p75 = por %p73, %p74
      %p76 = scmp.ne.s32.totalorder %s68, %s71
      %p77 = scmp.eq.s32.totalorder %s11, 0
      %p78 = por %p76, %p77
      %p79 = scmp.ne.s32.totalorder %s68, %s71
      %p80 = scmp.eq.s32.totalorder %s16, 1
      %p81 = por %p79, %p80
      %p82 = scmp.ne.s32.totalorder %s71, %s72
      %p83 = scmp.eq.s32.totalorder %s16, 0
      %p84 = por %p82, %p83
      %p85 = scmp.ne.s32.totalorder %s71, %s72
      %p86 = scmp.eq.s32.totalorder %s17, 1
      %p87 = por %p85, %p86
      %p89 = scmp.ne.s32.totalorder %s72, %s88
      %p90 = scmp.eq.s32.totalorder %s17, 0
      %p91 = por %p89, %p90
      %p92 = scmp.le.s32.totalorder 1, %s11
      %p93 = scmp.lt.s32.totalorder %s11, 3
      %p94 = pnand %p92, %p93
      %p95 = pneg %p94
      // Predicated region
      $region9: #{tpu_custom_call.1} parent=5 // pred_check
        _
      $region10: #{tpu_custom_call.1} parent=5 // pred_check_branch
        %97 = sbr.rel (%p94) target = $region12
      $region11: #{tpu_custom_call.1} parent=5 // pred_region
        %s98 = ssub.s32 %s11, 1
        // Predicated region
        $region13: #{tpu_custom_call.1} parent=11 // pred_check
          %p99 = pneg %p58
        $region14: #{tpu_custom_call.1} parent=11 // pred_check_branch
          %101 = sbr.rel (%p99) target = $region16
        $region15: #{tpu_custom_call.1} parent=11 // pred_region
          _
        $region16: #{tpu_custom_call.1} parent=11 // pred_fallthru
          _
      $region12: #{tpu_custom_call.1} parent=5 // pred_fallthru
        _
      %p102 = scmp.lt.s32.totalorder %s11, 2
      // Predicated region
      $region17: #{tpu_custom_call.1} parent=5 // pred_check
        %p103 = pneg %p102
      $region18: #{tpu_custom_call.1} parent=5 // pred_check_branch
        %105 = sbr.rel (%p103) target = $region20
      $region19: #{tpu_custom_call.1} parent=5 // pred_region
        // Predicated region
        $region21: #{tpu_custom_call.1} parent=19 // pred_check
          %p106 = pneg %p31
        $region22: #{tpu_custom_call.1} parent=19 // pred_check_branch
          %108 = sbr.rel (%p106) target = $region24
        $region23: #{tpu_custom_call.1} parent=19 // pred_region
          %s109 = smul.u32 32, %s11
          %p110 = scmp.lt.s32.totalorder %s109, 63
          %s111 = scalar_select %p110, %s109, 63
          %s112 = smul.addr %s111, 8
          %s113 = scalar_lea.vmem %s0, %s112
          %s114 = smul.u32 32, %s11
        $region24: #{tpu_custom_call.1} parent=19 // pred_fallthru
          _
      $region20: #{tpu_custom_call.1} parent=5 // pred_fallthru
        _
      %p115 = scmp.le.s32.totalorder 1, %s11
      %p116 = scmp.lt.s32.totalorder %s11, 3
      %p117 = pnand %p115, %p116
      %p118 = pneg %p117
      // Predicated region
      $region25: #{tpu_custom_call.1} parent=5 // pred_check
        _
      $region26: #{tpu_custom_call.1} parent=5 // pred_check_branch
        %120 = sbr.rel (%p117) target = $region28
      $region27: #{tpu_custom_call.1} parent=5 // pred_region
        %s121 = ssub.s32 %s11, 1
        %s122 = smul.u32 32, %s16
        %p123 = scmp.lt.s32.totalorder %s122, 63
        %s124 = scalar_select %p123, %s122, 63
        %s125 = smul.addr %s124, 8
        %s126 = scalar_lea.vmem %s0, %s125
        %p127 = pneg %p37
        %p128 = pneg %p34
        %p129 = pneg %p58
        %p130 = pneg %p55
        %p131 = pneg %p84
        %p132 = pneg %p81
        %s133 = sand.u32 %s71, 1
        %s134 = scalar_lea.sflag [#allocation3], %s133
        %s135 = sand.u32 %s71, 1
        %s136 = smul.addr %s135, 256
        %s137 = scalar_lea.vmem [#allocation2], %s136
        %s138 = smul.u32 32, %s16
        %p139 = scmp.lt.s32.totalorder %s138, 63
        %s140 = scalar_select %p139, %s138, 63
        %s141 = smul.addr %s140, 8
        %s142 = scalar_lea.vmem %s0, %s141
        %s143 = smul.u32 32, %s16
        %s144 = smul.u32 32, %s16
        %v145 = vld [vmem:[%s142] sm:$0xff]
        %v146 = vld [vmem:[%s142 + $0x8] sm:$0xff]
        %v147 = vld [vmem:[%s142 + $0x10] sm:$0xff]
        %v148 = vld [vmem:[%s142 + $0x18] sm:$0xff]
        %v149 = vld [vmem:[%s142 + $0x20] sm:$0xff]
        %v150 = vld [vmem:[%s142 + $0x28] sm:$0xff]
        %v151 = vld [vmem:[%s142 + $0x30] sm:$0xff]
        %v152 = vld [vmem:[%s142 + $0x38] sm:$0xff]
        %v153 = vld [vmem:[%s142 + $0x40] sm:$0xff]
        %v154 = vld [vmem:[%s142 + $0x48] sm:$0xff]
        %v155 = vld [vmem:[%s142 + $0x50] sm:$0xff]
        %v156 = vld [vmem:[%s142 + $0x58] sm:$0xff]
        %v157 = vld [vmem:[%s142 + $0x60] sm:$0xff]
        %v158 = vld [vmem:[%s142 + $0x68] sm:$0xff]
        %v159 = vld [vmem:[%s142 + $0x70] sm:$0xff]
        %v160 = vld [vmem:[%s142 + $0x78] sm:$0xff]
        %v161 = vld [vmem:[%s142 + $0x80] sm:$0xff]
        %v162 = vld [vmem:[%s142 + $0x88] sm:$0xff]
        %v163 = vld [vmem:[%s142 + $0x90] sm:$0xff]
        %v164 = vld [vmem:[%s142 + $0x98] sm:$0xff]
        %v165 = vld [vmem:[%s142 + $0xa0] sm:$0xff]
        %v166 = vld [vmem:[%s142 + $0xa8] sm:$0xff]
        %v167 = vld [vmem:[%s142 + $0xb0] sm:$0xff]
        %v168 = vld [vmem:[%s142 + $0xb8] sm:$0xff]
        %v169 = vld [vmem:[%s142 + $0xc0] sm:$0xff]
        %v170 = vld [vmem:[%s142 + $0xc8] sm:$0xff]
        %v171 = vld [vmem:[%s142 + $0xd0] sm:$0xff]
        %v172 = vld [vmem:[%s142 + $0xd8] sm:$0xff]
        %v173 = vld [vmem:[%s142 + $0xe0] sm:$0xff]
        %v174 = vld [vmem:[%s142 + $0xe8] sm:$0xff]
        %v175 = vld [vmem:[%s142 + $0xf0] sm:$0xff]
        %v176 = vld [vmem:[%s142 + $0xf8] sm:$0xff]
        %v177 = vld [vmem:[%s1] sm:$0xff]
        %v178 = vld [vmem:[%s1 + $0x8] sm:$0xff]
        %v179 = vld [vmem:[%s1 + $0x10] sm:$0xff]
        %v180 = vld [vmem:[%s1 + $0x18] sm:$0xff]
        %v181 = vld [vmem:[%s1 + $0x20] sm:$0xff]
        %v182 = vld [vmem:[%s1 + $0x28] sm:$0xff]
        %v183 = vld [vmem:[%s1 + $0x30] sm:$0xff]
        %v184 = vld [vmem:[%s1 + $0x38] sm:$0xff]
        %v185 = vld [vmem:[%s1 + $0x40] sm:$0xff]
        %v186 = vld [vmem:[%s1 + $0x48] sm:$0xff]
        %v187 = vld [vmem:[%s1 + $0x50] sm:$0xff]
        %v188 = vld [vmem:[%s1 + $0x58] sm:$0xff]
        %vm189 = vcmask 785408
        %v191 = vsel %vm189, %v145, 0
        %v194 = vsel %vm189, %v146, 0
        %v197 = vsel %vm189, %v147, 0
        %v200 = vsel %vm189, %v148, 0
        %v203 = vsel %vm189, %v149, 0
        %v206 = vsel %vm189, %v150, 0
        %v209 = vsel %vm189, %v151, 0
        %v212 = vsel %vm189, %v152, 0
        %v215 = vsel %vm189, %v153, 0
        %v218 = vsel %vm189, %v154, 0
        %v221 = vsel %vm189, %v155, 0
        %v224 = vsel %vm189, %v156, 0
        %v227 = vsel %vm189, %v157, 0
        %v230 = vsel %vm189, %v158, 0
        %v233 = vsel %vm189, %v159, 0
        %v236 = vsel %vm189, %v160, 0
        %v239 = vsel %vm189, %v161, 0
        %v242 = vsel %vm189, %v162, 0
        %v245 = vsel %vm189, %v163, 0
        %v248 = vsel %vm189, %v164, 0
        %v251 = vsel %vm189, %v165, 0
        %v254 = vsel %vm189, %v166, 0
        %v257 = vsel %vm189, %v167, 0
        %v260 = vsel %vm189, %v168, 0
        %v263 = vsel %vm189, %v169, 0
        %v266 = vsel %vm189, %v170, 0
        %v269 = vsel %vm189, %v171, 0
        %v272 = vsel %vm189, %v172, 0
        %v275 = vsel %vm189, %v173, 0
        %v278 = vsel %vm189, %v174, 0
        %v281 = vsel %vm189, %v175, 0
        %v284 = vsel %vm189, %v176, 0
        %286 = vmatpush.msra.mxu0 0.0
        %287 = vmatpush.msra.mxu0 0.0
        %288 = vmatpush.msra.mxu0 0.0
        %289 = vmatpush.msra.mxu0 0.0
        %290 = vmatpush.msra.mxu0 %v188
        %291 = vmatpush.msra.mxu0 %v187
        %292 = vmatpush.msra.mxu0 %v186
        %293 = vmatpush.msra.mxu0 %v185
        %294 = vmatpush.msra.mxu0 %v184
        %295 = vmatpush.msra.mxu0 %v183
        %296 = vmatpush.msra.mxu0 %v182
        %297 = vmatpush.msra.mxu0 %v181
        %298 = vmatpush.msra.mxu0 %v180
        %299 = vmatpush.msra.mxu0 %v179
        %300 = vmatpush.msra.mxu0 %v178
        %301 = vmatpush.msra.mxu0 %v177
        %302 = vmatmul.f32.gmra.mxu0 %v191
        %v303 = vpop.f32.mrf.mxu0
        %v304 = vadd.f32 0.0, %v303
        %305 = vmatmul.f32.gmra.mxu0 %v194
        %v306 = vpop.f32.mrf.mxu0
        %v307 = vadd.f32 0.0, %v306
        %308 = vmatmul.f32.gmra.mxu0 %v197
        %v309 = vpop.f32.mrf.mxu0
        %v310 = vadd.f32 0.0, %v309
        %311 = vmatmul.f32.gmra.mxu0 %v200
        %v312 = vpop.f32.mrf.mxu0
        %v313 = vadd.f32 0.0, %v312
        %314 = vmatmul.f32.gmra.mxu0 %v203
        %v315 = vpop.f32.mrf.mxu0
        %v316 = vadd.f32 0.0, %v315
        %317 = vmatmul.f32.gmra.mxu0 %v206
        %v318 = vpop.f32.mrf.mxu0
        %v319 = vadd.f32 0.0, %v318
        %320 = vmatmul.f32.gmra.mxu0 %v209
        %v321 = vpop.f32.mrf.mxu0
        %v322 = vadd.f32 0.0, %v321
        %323 = vmatmul.f32.gmra.mxu0 %v212
        %v324 = vpop.f32.mrf.mxu0
        %v325 = vadd.f32 0.0, %v324
        %326 = vmatmul.f32.gmra.mxu0 %v215
        %v327 = vpop.f32.mrf.mxu0
        %v328 = vadd.f32 0.0, %v327
        %329 = vmatmul.f32.gmra.mxu0 %v218
        %v330 = vpop.f32.mrf.mxu0
        %v331 = vadd.f32 0.0, %v330
        %332 = vmatmul.f32.gmra.mxu0 %v221
        %v333 = vpop.f32.mrf.mxu0
        %v334 = vadd.f32 0.0, %v333
        %335 = vmatmul.f32.gmra.mxu0 %v224
        %v336 = vpop.f32.mrf.mxu0
        %v337 = vadd.f32 0.0, %v336
        %338 = vmatmul.f32.gmra.mxu0 %v227
        %v339 = vpop.f32.mrf.mxu0
        %v340 = vadd.f32 0.0, %v339
        %341 = vmatmul.f32.gmra.mxu0 %v230
        %v342 = vpop.f32.mrf.mxu0
        %v343 = vadd.f32 0.0, %v342
        %344 = vmatmul.f32.gmra.mxu0 %v233
        %v345 = vpop.f32.mrf.mxu0
        %v346 = vadd.f32 0.0, %v345
        %347 = vmatmul.f32.gmra.mxu0 %v236
        %v348 = vpop.f32.mrf.mxu0
        %v349 = vadd.f32 0.0, %v348
        %350 = vmatmul.f32.gmra.mxu0 %v239
        %v351 = vpop.f32.mrf.mxu0
        %v352 = vadd.f32 0.0, %v351
        %353 = vmatmul.f32.gmra.mxu0 %v242
        %v354 = vpop.f32.mrf.mxu0
        %v355 = vadd.f32 0.0, %v354
        %356 = vmatmul.f32.gmra.mxu0 %v245
        %v357 = vpop.f32.mrf.mxu0
        %v358 = vadd.f32 0.0, %v357
        %359 = vmatmul.f32.gmra.mxu0 %v248
        %v360 = vpop.f32.mrf.mxu0
        %v361 = vadd.f32 0.0, %v360
        %362 = vmatmul.f32.gmra.mxu0 %v251
        %v363 = vpop.f32.mrf.mxu0
        %v364 = vadd.f32 0.0, %v363
        %365 = vmatmul.f32.gmra.mxu0 %v254
        %v366 = vpop.f32.mrf.mxu0
        %v367 = vadd.f32 0.0, %v366
        %368 = vmatmul.f32.gmra.mxu0 %v257
        %v369 = vpop.f32.mrf.mxu0
        %v370 = vadd.f32 0.0, %v369
        %371 = vmatmul.f32.gmra.mxu0 %v260
        %v372 = vpop.f32.mrf.mxu0
        %v373 = vadd.f32 0.0, %v372
        %374 = vmatmul.f32.gmra.mxu0 %v263
        %v375 = vpop.f32.mrf.mxu0
        %v376 = vadd.f32 0.0, %v375
        %377 = vmatmul.f32.gmra.mxu0 %v266
        %v378 = vpop.f32.mrf.mxu0
        %v379 = vadd.f32 0.0, %v378
        %380 = vmatmul.f32.gmra.mxu0 %v269
        %v381 = vpop.f32.mrf.mxu0
        %v382 = vadd.f32 0.0, %v381
        %383 = vmatmul.f32.gmra.mxu0 %v272
        %v384 = vpop.f32.mrf.mxu0
        %v385 = vadd.f32 0.0, %v384
        %386 = vmatmul.f32.gmra.mxu0 %v275
        %v387 = vpop.f32.mrf.mxu0
        %v388 = vadd.f32 0.0, %v387
        %389 = vmatmul.f32.gmra.mxu0 %v278
        %v390 = vpop.f32.mrf.mxu0
        %v391 = vadd.f32 0.0, %v390
        %392 = vmatmul.f32.gmra.mxu0 %v281
        %v393 = vpop.f32.mrf.mxu0
        %v394 = vadd.f32 0.0, %v393
        %395 = vmatmul.f32.gmra.mxu0 %v284
        %v396 = vpop.f32.mrf.mxu0
        %v397 = vadd.f32 0.0, %v396
        %398 = vdwg.mxu0
        %399 = vst [vmem:[%s137] sm:$0xff] %v304
        %400 = vst [vmem:[%s137 + $0x8] sm:$0xff] %v307
        %401 = vst [vmem:[%s137 + $0x10] sm:$0xff] %v310
        %402 = vst [vmem:[%s137 + $0x18] sm:$0xff] %v313
        %403 = vst [vmem:[%s137 + $0x20] sm:$0xff] %v316
        %404 = vst [vmem:[%s137 + $0x28] sm:$0xff] %v319
        %405 = vst [vmem:[%s137 + $0x30] sm:$0xff] %v322
        %406 = vst [vmem:[%s137 + $0x38] sm:$0xff] %v325
        %407 = vst [vmem:[%s137 + $0x40] sm:$0xff] %v328
        %408 = vst [vmem:[%s137 + $0x48] sm:$0xff] %v331
        %409 = vst [vmem:[%s137 + $0x50] sm:$0xff] %v334
        %410 = vst [vmem:[%s137 + $0x58] sm:$0xff] %v337
        %411 = vst [vmem:[%s137 + $0x60] sm:$0xff] %v340
        %412 = vst [vmem:[%s137 + $0x68] sm:$0xff] %v343
        %413 = vst [vmem:[%s137 + $0x70] sm:$0xff] %v346
        %414 = vst [vmem:[%s137 + $0x78] sm:$0xff] %v349
        %415 = vst [vmem:[%s137 + $0x80] sm:$0xff] %v352
        %416 = vst [vmem:[%s137 + $0x88] sm:$0xff] %v355
        %417 = vst [vmem:[%s137 + $0x90] sm:$0xff] %v358
        %418 = vst [vmem:[%s137 + $0x98] sm:$0xff] %v361
        %419 = vst [vmem:[%s137 + $0xa0] sm:$0xff] %v364
        %420 = vst [vmem:[%s137 + $0xa8] sm:$0xff] %v367
        %421 = vst [vmem:[%s137 + $0xb0] sm:$0xff] %v370
        %422 = vst [vmem:[%s137 + $0xb8] sm:$0xff] %v373
        %423 = vst [vmem:[%s137 + $0xc0] sm:$0xff] %v376
        %424 = vst [vmem:[%s137 + $0xc8] sm:$0xff] %v379
        %425 = vst [vmem:[%s137 + $0xd0] sm:$0xff] %v382
        %426 = vst [vmem:[%s137 + $0xd8] sm:$0xff] %v385
        %427 = vst [vmem:[%s137 + $0xe0] sm:$0xff] %v388
        %428 = vst [vmem:[%s137 + $0xe8] sm:$0xff] %v391
        %429 = vst [vmem:[%s137 + $0xf0] sm:$0xff] %v394
        %430 = vst [vmem:[%s137 + $0xf8] sm:$0xff] %v397
        %s431 = sand.u32 %s71, 1
        %s432 = scalar_lea.sflag [#allocation3], %s431
        %s433 = sand.u32 %s71, 1
        %s434 = smul.addr %s433, 256
        %s435 = scalar_lea.vmem [#allocation2], %s434
        // Predicated region
        $region29: #{tpu_custom_call.1} parent=27 // pred_check
          %p436 = pneg %p81
        $region30: #{tpu_custom_call.1} parent=27 // pred_check_branch
          %438 = sbr.rel (%p436) target = $region32
        $region31: #{tpu_custom_call.1} parent=27 // pred_region
          %s439 = smul.u32 32, %s16
          %441 = vsyncadd %s432, 0
          %s442 = smul.addr %s439, 8
          %s443 = scalar_lea.hbm %s2, %s442
          %s444 = sshll.u32 %s435, 4
          %s445 = int_to_ptr.vmem [resolvable:$true] %s444
          %s446 = sshll.u32 %s443, 4
          %s447 = int_to_ptr.hbm [resolvable:$true] %s446
          %452 = dma.vmem_to_hbm [thread:$0]  %s445, 4096, %s447, %s432, 128, 128, 8
        $region32: #{tpu_custom_call.1} parent=27 // pred_fallthru
          _
      $region28: #{tpu_custom_call.1} parent=5 // pred_fallthru
        _
      %p453 = scmp.le.s32.totalorder 2, %s11
      // Predicated region
      $region33: #{tpu_custom_call.1} parent=5 // pred_check
        %p454 = pneg %p453
      $region34: #{tpu_custom_call.1} parent=5 // pred_check_branch
        %456 = sbr.rel (%p454) target = $region36
      $region35: #{tpu_custom_call.1} parent=5 // pred_region
        %s457 = ssub.s32 %s11, 2
        // Predicated region
        $region37: #{tpu_custom_call.1} parent=35 // pred_check
          %p458 = pneg %p87
        $region38: #{tpu_custom_call.1} parent=35 // pred_check_branch
          %460 = sbr.rel (%p458) target = $region40
        $region39: #{tpu_custom_call.1} parent=35 // pred_region
          %s461 = sand.u32 %s72, 1
          %s462 = scalar_lea.sflag [#allocation3], %s461
          %s463 = sand.u32 %s72, 1
          %s464 = smul.addr %s463, 256
          %s465 = scalar_lea.vmem [#allocation2], %s464
          %467 = dma.done %s462, 4096
        $region40: #{tpu_custom_call.1} parent=35 // pred_fallthru
          _
      $region36: #{tpu_custom_call.1} parent=5 // pred_fallthru
        _
    $region6: #{tpu_custom_call.1} parent=1 // loop_footer
      %s15 = sadd.s32 1, %s11
    $region7: #{tpu_custom_call.1} parent=1 // loop_footer_branch
      %10 = sbr.rel target = $region3
    $region8: #{tpu_custom_call.1} parent=1 // loop_exit
      _
    %468 = vsyncpa [#allocation3], 1
    %s469 = scalar_lea.sflag [#allocation3], 1
    %470 = vsyncpa %s469, 1

</llo_original>
